<compile_context>
chip_gen: v5e
topology: v5e:2x2
jax: 0.10.0
libtpu: 0.0.40
codegen_flags: <defaults>
</compile_context>

<pallas_src>
import math
from math import prod

import jax
import jax.numpy as jnp
from jax.experimental import pallas as pl
from jax.experimental.pallas import tpu as pltpu


# ----------------------------- Pallas kernel --------------------------------

def _proj_kernel(x_ref, w_ref, b_ref, o_ref):
    # x_ref: (tm, Kp) packed patch rows
    # w_ref: (Kp, te) (block-diagonal) projection weight slice
    # b_ref: (1,  te) bias slice (f32)
    # o_ref: (tm, te)
    acc = jnp.dot(x_ref[...], w_ref[...], preferred_element_type=jnp.float32)
    o_ref[...] = (acc + b_ref[...].astype(jnp.float32)).astype(o_ref.dtype)


def packed_patch_proj(patches, weight, bias, *, out_dtype, tm_max=512, te_max=512):
    """patches: (Mp, Kp), weight: (Kp, Ep), bias: (1, Ep) -> (Mp, Ep)."""
    Mp, Kp = patches.shape
    Kw, Ep = weight.shape
    assert Kw == Kp and bias.shape == (1, Ep)

    # Row / output-column tiles.  Full dims are always legal block dims; otherwise the
    # tile sizes below are multiples of (8, 128).
    tm = Mp if Mp <= tm_max else tm_max          # tm_max is a multiple of 8
    te = Ep if Ep <= te_max else te_max          # te_max is a multiple of 128

    # Explicit VMEM budget (double-buffered in/out tiles + weight + bias).  Keep it under
    # a conservative 12 MiB so it fits every generation's default scoped VMEM (v5e 16 MiB,
    # v6e/v7x 32 MiB) with headroom; shrink tm if a large K/E config would overflow.
    in_sz = patches.dtype.itemsize
    w_sz = weight.dtype.itemsize
    out_sz = jnp.dtype(out_dtype).itemsize

    def vmem_est(tm_):
        return (2 * tm_ * Kp * in_sz + 2 * tm_ * te * out_sz
                + 2 * Kp * te * w_sz + 2 * te * 4)

    while tm > 8 and vmem_est(tm) > 12 * (1 << 20):
        tm = max(8, tm // 2)

    vmem_limit = int(min(max(2 * vmem_est(tm), 16 * (1 << 20)), 32 * (1 << 20)))

    grid = (pl.cdiv(Mp, tm), pl.cdiv(Ep, te))    # rows outer, E inner -> x fetched once/row tile

    return pl.pallas_call(
        _proj_kernel,
        out_shape=jax.ShapeDtypeStruct((Mp, Ep), out_dtype),
        grid_spec=pltpu.PrefetchScalarGridSpec(
            num_scalar_prefetch=0,
            grid=grid,
            in_specs=[
                pl.BlockSpec((tm, Kp), lambda i, j: (i, 0)),
                pl.BlockSpec((Kp, te), lambda i, j: (0, j)),
                pl.BlockSpec((1, te), lambda i, j: (0, j)),
            ],
            out_specs=pl.BlockSpec((tm, te), lambda i, j: (i, j)),
        ),
        compiler_params=pltpu.CompilerParams(
            dimension_semantics=("parallel", "parallel"),
            vmem_limit_bytes=vmem_limit,
        ),
    )(patches, weight, bias)


# --------------------------- PatchEmbed wrapper ------------------------------

class PatchEmbedPallas:
    """n-D image -> patch embedding (PyTorch PatchEmbed semantics, norm=Identity)."""

    def __init__(self, img_size=(16, 16, 16), patch_size=(2, 2, 2), in_chans=3,
                 embed_dim=768, bias=True, flatten=True, dim=3,
                 compute_dtype=None, key=None):
        assert len(img_size) == len(patch_size) == dim
        self.dim = dim
        self.img_size = tuple(img_size)
        self.patch_size = tuple(patch_size)
        self.in_chans = in_chans
        self.embed_dim = embed_dim
        self.flatten = flatten
        self.compute_dtype = compute_dtype
        self.grid_size = tuple(s // p for s, p in zip(img_size, patch_size))
        self.num_patches = prod(self.grid_size)
        self.K = in_chans * prod(patch_size)

        key = jax.random.PRNGKey(42) if key is None else key
        kw, kb = jax.random.split(key)
        bound = 1.0 / math.sqrt(self.K)
        # Conv weight (E, C, *patch) flattened to (E, K) and stored transposed (K, E).
        self.weight = jax.random.uniform(kw, (self.K, embed_dim),
                                         minval=-bound, maxval=bound, dtype=jnp.float32)
        if bias:
            self.bias = jax.random.uniform(kb, (embed_dim,),
                                           minval=-bound, maxval=bound, dtype=jnp.float32)
        else:
            self.bias = jnp.zeros((embed_dim,), jnp.float32)

    # How many consecutive patches to pack into one GEMM row so that both the contraction
    # dim (r*K) and the output lane dim (r*E) become lane-dense, without increasing the
    # number of MXU passes (r*K <= 256) or blowing up the block-diagonal weight (<= 2 MiB).
    def _pack_factor(self, M):
        K, E = self.K, self.embed_dim
        r = 1

        def ok(rr):
            return (M % rr == 0 and rr * K <= 256
                    and rr * rr * K * E * 4 <= (2 << 20))

        while (r * K < 128 or r * E < 128) and ok(2 * r):
            r *= 2
        return r

    def __call__(self, x):
        B, C = x.shape[0], x.shape[1]
        assert C == self.in_chans and tuple(x.shape[2:]) == self.img_size

        g, p = self.grid_size, self.patch_size
        nd = self.dim

        # Space-to-depth patch extraction (single fused XLA reshape/transpose(+cast)).
        # Within-patch flatten order is (C, *patch) to match the Conv-nd weight.
        xp = x.reshape((B, C) + tuple(v for gp in zip(g, p) for v in gp))
        perm = (0,) + tuple(2 + 2 * i for i in range(nd)) \
                    + (1,) + tuple(3 + 2 * i for i in range(nd))
        xp = jnp.transpose(xp, perm)                              # (B, *grid, C, *patch)
        patches = xp.reshape(B * self.num_patches, self.K)        # (M, K)
        if self.compute_dtype is not None:
            patches = patches.astype(self.compute_dtype)

        M = patches.shape[0]
        r = self._pack_factor(M)

        w = self.weight if self.compute_dtype is None else self.weight.astype(self.compute_dtype)
        b = self.bias
        if r > 1:
            patches = patches.reshape(M // r, r * self.K)         # free row-major reshape
            w = jnp.kron(jnp.eye(r, dtype=w.dtype), w)            # block-diagonal (rK, rE)
            b = jnp.tile(b, r)

        out = packed_patch_proj(patches, w, b.reshape(1, -1), out_dtype=x.dtype)
        out = out.reshape(B, self.num_patches, self.embed_dim)    # unpack (free reshape)

        if not self.flatten:
            out = jnp.moveaxis(out.reshape((B,) + self.grid_size + (self.embed_dim,)), -1, 1)
        return out                                                # norm = Identity


# --------------------------------- main --------------------------------------

if __name__ == "__main__":
    key = jax.random.PRNGKey(0)
    B, C = 2, 4
    img_size = (16, 16, 16)
    patch_size = (2, 2, 2)
    embed_dim = 32

    x = jax.random.normal(key, (B, C) + img_size, dtype=jnp.float32)

    pe = PatchEmbedPallas(img_size=img_size, patch_size=patch_size, in_chans=C,
                          embed_dim=embed_dim, key=jax.random.PRNGKey(1))

    out = jax.block_until_ready(pe(x))
    assert out.shape == (B, pe.num_patches, embed_dim)

    # Reference 1: plain JAX patch extraction + high-precision matmul.
    xp = x.reshape((B, C) + tuple(v for gp in zip(pe.grid_size, patch_size) for v in gp))
    xp = jnp.transpose(xp, (0, 2, 4, 6, 1, 3, 5, 7)).reshape(B * pe.num_patches, pe.K)
    ref = jnp.dot(xp, pe.weight, precision=jax.lax.Precision.HIGHEST) + pe.bias
    ref = ref.reshape(B, pe.num_patches, embed_dim)
    assert jnp.allclose(out, ref, atol=1e-3, rtol=1e-3)

    # Reference 2: actual strided 3-D convolution (PyTorch Conv3d semantics).
    w_conv = pe.weight.T.reshape(embed_dim, C, *patch_size)       # (E, C, pd, ph, pw)
    ref_conv = jax.lax.conv_general_dilated(
        x, w_conv, window_strides=patch_size, padding="VALID",
        dimension_numbers=("NCDHW", "OIDHW", "NCDHW"),
        precision=jax.lax.Precision.HIGHEST)
    ref_conv = ref_conv.reshape(B, embed_dim, -1).transpose(0, 2, 1) + pe.bias
    assert jnp.allclose(out, ref_conv, atol=1e-3, rtol=1e-3)

    print("KERNEL_OK")
</pallas_src>

<mosaic_0001>
module attributes {stable_mosaic.version = 11 : i64} {
  func.func @_proj_kernel(%arg0: i32, %arg1: i32, %arg2: memref<256x128xf32, #tpu.memory_space<vmem>>, %arg3: memref<128x128xf32, #tpu.memory_space<vmem>>, %arg4: memref<1x128xf32, #tpu.memory_space<vmem>>, %arg5: memref<256x128xf32, #tpu.memory_space<vmem>>) attributes {dimension_semantics = [#tpu.dimension_semantics<parallel>, #tpu.dimension_semantics<parallel>], iteration_bounds = array<i64: 1, 1>, scalar_prefetch = 0 : i64, scratch_operands = 0 : i64, tpu.core_type = #tpu.core_type<tc>, window_params = [{transform_indices = @transform_0, window_bounds = array<i64: 256, 128>}, {transform_indices = @transform_1, window_bounds = array<i64: 128, 128>}, {transform_indices = @transform_2, window_bounds = array<i64: 1, 128>}, {transform_indices = @transform_3, window_bounds = array<i64: 256, 128>}]} {
    %c0 = arith.constant 0 : index
    %c0_0 = arith.constant 0 : index
    %0 = vector.load %arg2[%c0, %c0_0] : memref<256x128xf32, #tpu.memory_space<vmem>>, vector<256x128xf32>
    %c0_1 = arith.constant 0 : index
    %c0_2 = arith.constant 0 : index
    %1 = vector.load %arg3[%c0_1, %c0_2] : memref<128x128xf32, #tpu.memory_space<vmem>>, vector<128x128xf32>
    %cst = arith.constant dense<0.000000e+00> : vector<256x128xf32>
    %2 = tpu.matmul %0, %1, %cst {dimension_numbers = #tpu.dot_dimension_numbers<[1], [0], [0], [1], [0, 0, 1, 1], [], []>} : vector<256x128xf32>, vector<128x128xf32>, vector<256x128xf32> -> vector<256x128xf32>
    %c0_3 = arith.constant 0 : index
    %c0_4 = arith.constant 0 : index
    %3 = vector.load %arg4[%c0_3, %c0_4] : memref<1x128xf32, #tpu.memory_space<vmem>>, vector<1x128xf32>
    %4 = vector.broadcast %3 : vector<1x128xf32> to vector<256x128xf32>
    %5 = arith.addf %2, %4 : vector<256x128xf32>
    %c0_5 = arith.constant 0 : index
    %c0_6 = arith.constant 0 : index
    %6 = vector.load %arg5[%c0_5, %c0_6] : memref<256x128xf32, #tpu.memory_space<vmem>>, vector<256x128xf32>
    tpu.vector_store %arg5[%c0_5, %c0_6], %5 {strides = array<i32>} : memref<256x128xf32, #tpu.memory_space<vmem>>, vector<256x128xf32>,
    return
  }
  func.func @transform_0(%arg0: i32, %arg1: i32) -> (i32, i32) {
    %c0_i32 = arith.constant 0 : i32
    %c0_i32_0 = arith.constant 0 : i32
    return %arg0, %c0_i32 : i32, i32
  }
  func.func @transform_1(%arg0: i32, %arg1: i32) -> (i32, i32) {
    %c0_i32 = arith.constant 0 : i32
    %c0_i32_0 = arith.constant 0 : i32
    return %c0_i32, %arg1 : i32, i32
  }
  func.func @transform_2(%arg0: i32, %arg1: i32) -> (i32, i32) {
    %c0_i32 = arith.constant 0 : i32
    %c0_i32_0 = arith.constant 0 : i32
    return %c0_i32, %arg1 : i32, i32
  }
  func.func @transform_3(%arg0: i32, %arg1: i32) -> (i32, i32) {
    %c0_i32 = arith.constant 0 : i32
    return %arg0, %arg1 : i32, i32
  }
}

</mosaic_0001>

<llo_original>
// kernel: tpu_custom_call.1
$region0: #{tpu_custom_call.1}
  #allocation0 [shape = 'u32[]', space=smem, size = 0x4, offset = 0x4, fixed_abs, tag = 'smem constant byte address 0x4 - core index']
  #allocation1 [shape = 'u32[72,128]{1,0:T(1,128)}', space=vmem, size = 0x9000, scoped, tag = 'internal scratch']
  %s0 = inlined_call_operand.hbm [shape: f32[256,128], index: 0, kind: input, shape index: {}]
  %s1 = inlined_call_operand.hbm [shape: f32[128,128], index: 1, kind: input, shape index: {}]
  %s2 = inlined_call_operand.vmem [shape: f32[1,128], index: 2, kind: input, shape index: {}]
  %s3 = inlined_call_operand.hbm [shape: f32[256,128], index: 3, kind: output, shape index: {}]
  %s4 = sld [smem:[#allocation0]]
  $region30: #{tpu_custom_call.1} parent=0
    _
  %s6 = ssub.s32 1, %s4
  %s7 = scalar_select 0, %s6, %s4
  $region1: #{tpu_custom_call.1} parent=0
    #allocation2 [shape = 'u8[131072]{0}', space=vmem, size = 0x20000, scoped, tag = 'input window, operand 0, single buffered']
    #allocation3 [shape = 's32[1]{0}', space=sflag, size = 0x4, scoped, tag = 'scoped memory for tpu_custom_call.1']
    #allocation4 [shape = 's32[1]{0}', space=sflag, size = 0x4, scoped, tag = 'scoped memory for tpu_custom_call.1']
    #allocation5 [shape = 'u8[65536]{0}', space=vmem, size = 0x10000, scoped, tag = 'input window, operand 1, single buffered']
    #allocation6 [shape = 's32[1]{0}', space=sflag, size = 0x4, scoped, tag = 'scoped memory for tpu_custom_call.1']
    #allocation7 [shape = 'u8[131072]{0}', space=vmem, size = 0x20000, scoped, tag = 'output window, operand 0, single buffered']
    %8 = vsyncpa [#allocation3], 0
    %9 = vsyncpa [#allocation6], 0
    %10 = vsyncpa [#allocation4], 0
    // Predicated region
    $region2: #{tpu_custom_call.1} parent=1 // pred_check
      _
    $region3: #{tpu_custom_call.1} parent=1 // pred_check_branch
      %12 = sbr.rel (0) target = $region5
    $region4: #{tpu_custom_call.1} parent=1 // pred_region
      %14 = vsyncadd [#allocation3], 0
      %s15 = sshll.u32 %s0, 4
      %s16 = int_to_ptr.hbm [resolvable:$true] %s15
      %s17 = sshll.u32 [#allocation2], 4
      %s18 = int_to_ptr.vmem [resolvable:$true] %s17
      %23 = dma.hbm_to_vmem [thread:$0]  %s16, 4096, %s18, [#allocation3], 128, 128, 8
    $region5: #{tpu_custom_call.1} parent=1 // pred_fallthru
      _
    // Predicated region
    $region6: #{tpu_custom_call.1} parent=1 // pred_check
      _
    $region7: #{tpu_custom_call.1} parent=1 // pred_check_branch
      %25 = sbr.rel (0) target = $region9
    $region8: #{tpu_custom_call.1} parent=1 // pred_region
      %27 = vsyncadd [#allocation6], 0
      %s28 = sshll.u32 %s1, 4
      %s29 = int_to_ptr.hbm [resolvable:$true] %s28
      %s30 = sshll.u32 [#allocation5], 4
      %s31 = int_to_ptr.vmem [resolvable:$true] %s30
      %36 = dma.hbm_to_vmem [thread:$0]  %s29, 2048, %s31, [#allocation6], 128, 128, 8
    $region9: #{tpu_custom_call.1} parent=1 // pred_fallthru
      _
    // Predicated region
    $region10: #{tpu_custom_call.1} parent=1 // pred_check
      _
    $region11: #{tpu_custom_call.1} parent=1 // pred_check_branch
      %38 = sbr.rel (0) target = $region13
    $region12: #{tpu_custom_call.1} parent=1 // pred_region
      _
    $region13: #{tpu_custom_call.1} parent=1 // pred_fallthru
      _
    // Predicated region
    $region14: #{tpu_custom_call.1} parent=1 // pred_check
      _
    $region15: #{tpu_custom_call.1} parent=1 // pred_check_branch
      %40 = sbr.rel (0) target = $region17
    $region16: #{tpu_custom_call.1} parent=1 // pred_region
      %42 = dma.done [#allocation3], 4096
    $region17: #{tpu_custom_call.1} parent=1 // pred_fallthru
      _
    // Predicated region
    $region18: #{tpu_custom_call.1} parent=1 // pred_check
      _
    $region19: #{tpu_custom_call.1} parent=1 // pred_check_branch
      %44 = sbr.rel (0) target = $region21
    $region20: #{tpu_custom_call.1} parent=1 // pred_region
      %46 = dma.done [#allocation6], 2048
    $region21: #{tpu_custom_call.1} parent=1 // pred_fallthru
      _
    %v47 = vld [vmem:[#allocation2] sm:$0xff]
    %v48 = vld [vmem:[#allocation2 + $0x8] sm:$0xff]
    %v49 = vld [vmem:[#allocation2 + $0x10] sm:$0xff]
    %v50 = vld [vmem:[#allocation2 + $0x18] sm:$0xff]
    %v51 = vld [vmem:[#allocation2 + $0x20] sm:$0xff]
    %v52 = vld [vmem:[#allocation2 + $0x28] sm:$0xff]
    %v53 = vld [vmem:[#allocation2 + $0x30] sm:$0xff]
    %v54 = vld [vmem:[#allocation2 + $0x38] sm:$0xff]
    %v55 = vld [vmem:[#allocation2 + $0x40] sm:$0xff]
    %v56 = vld [vmem:[#allocation2 + $0x48] sm:$0xff]
    %v57 = vld [vmem:[#allocation2 + $0x50] sm:$0xff]
    %v58 = vld [vmem:[#allocation2 + $0x58] sm:$0xff]
    %v59 = vld [vmem:[#allocation2 + $0x60] sm:$0xff]
    %v60 = vld [vmem:[#allocation2 + $0x68] sm:$0xff]
    %v61 = vld [vmem:[#allocation2 + $0x70] sm:$0xff]
    %v62 = vld [vmem:[#allocation2 + $0x78] sm:$0xff]
    %v63 = vld [vmem:[#allocation2 + $0x80] sm:$0xff]
    %v64 = vld [vmem:[#allocation2 + $0x88] sm:$0xff]
    %v65 = vld [vmem:[#allocation2 + $0x90] sm:$0xff]
    %v66 = vld [vmem:[#allocation2 + $0x98] sm:$0xff]
    %v67 = vld [vmem:[#allocation2 + $0xa0] sm:$0xff]
    %v68 = vld [vmem:[#allocation2 + $0xa8] sm:$0xff]
    %v69 = vld [vmem:[#allocation2 + $0xb0] sm:$0xff]
    %v70 = vld [vmem:[#allocation2 + $0xb8] sm:$0xff]
    %v71 = vld [vmem:[#allocation2 + $0xc0] sm:$0xff]
    %v72 = vld [vmem:[#allocation2 + $0xc8] sm:$0xff]
    %v73 = vld [vmem:[#allocation2 + $0xd0] sm:$0xff]
    %v74 = vld [vmem:[#allocation2 + $0xd8] sm:$0xff]
    %v75 = vld [vmem:[#allocation2 + $0xe0] sm:$0xff]
    %v76 = vld [vmem:[#allocation2 + $0xe8] sm:$0xff]
    %v77 = vld [vmem:[#allocation2 + $0xf0] sm:$0xff]
    %v78 = vld [vmem:[#allocation2 + $0xf8] sm:$0xff]
    %v79 = vld [vmem:[#allocation5] sm:$0xff]
    %v80 = vld [vmem:[#allocation5 + $0x8] sm:$0xff]
    %v81 = vld [vmem:[#allocation5 + $0x10] sm:$0xff]
    %v82 = vld [vmem:[#allocation5 + $0x18] sm:$0xff]
    %v83 = vld [vmem:[#allocation5 + $0x20] sm:$0xff]
    %v84 = vld [vmem:[#allocation5 + $0x28] sm:$0xff]
    %v85 = vld [vmem:[#allocation5 + $0x30] sm:$0xff]
    %v86 = vld [vmem:[#allocation5 + $0x38] sm:$0xff]
    %v87 = vld [vmem:[#allocation5 + $0x40] sm:$0xff]
    %v88 = vld [vmem:[#allocation5 + $0x48] sm:$0xff]
    %v89 = vld [vmem:[#allocation5 + $0x50] sm:$0xff]
    %v90 = vld [vmem:[#allocation5 + $0x58] sm:$0xff]
    %v91 = vld [vmem:[#allocation5 + $0x60] sm:$0xff]
    %v92 = vld [vmem:[#allocation5 + $0x68] sm:$0xff]
    %v93 = vld [vmem:[#allocation5 + $0x70] sm:$0xff]
    %v94 = vld [vmem:[#allocation5 + $0x78] sm:$0xff]
    %v95 = vld [vmem:[%s2] sm:$0x1]
    %v97 = vperm.slane %v95, 0
    %99 = vmatpush.msra.mxu0 %v94
    %100 = vmatpush.msra.mxu0 %v93
    %101 = vmatpush.msra.mxu0 %v92
    %102 = vmatpush.msra.mxu0 %v91
    %103 = vmatpush.msra.mxu0 %v90
    %104 = vmatpush.msra.mxu0 %v89
    %105 = vmatpush.msra.mxu0 %v88
    %106 = vmatpush.msra.mxu0 %v87
    %107 = vmatpush.msra.mxu0 %v86
    %108 = vmatpush.msra.mxu0 %v85
    %109 = vmatpush.msra.mxu0 %v84
    %110 = vmatpush.msra.mxu0 %v83
    %111 = vmatpush.msra.mxu0 %v82
    %112 = vmatpush.msra.mxu0 %v81
    %113 = vmatpush.msra.mxu0 %v80
    %114 = vmatpush.msra.mxu0 %v79
    %115 = vmatmul.f32.gmra.mxu0 %v47
    %v116 = vpop.f32.mrf.mxu0
    %v117 = vadd.f32 %v97, %v116
    %118 = vmatmul.f32.gmra.mxu0 %v48
    %v119 = vpop.f32.mrf.mxu0
    %v120 = vadd.f32 %v97, %v119
    %121 = vmatmul.f32.gmra.mxu0 %v49
    %v122 = vpop.f32.mrf.mxu0
    %v123 = vadd.f32 %v97, %v122
    %124 = vmatmul.f32.gmra.mxu0 %v50
    %v125 = vpop.f32.mrf.mxu0
    %v126 = vadd.f32 %v97, %v125
    %127 = vmatmul.f32.gmra.mxu0 %v51
    %v128 = vpop.f32.mrf.mxu0
    %v129 = vadd.f32 %v97, %v128
    %130 = vmatmul.f32.gmra.mxu0 %v52
    %v131 = vpop.f32.mrf.mxu0
    %v132 = vadd.f32 %v97, %v131
    %133 = vmatmul.f32.gmra.mxu0 %v53
    %v134 = vpop.f32.mrf.mxu0
    %v135 = vadd.f32 %v97, %v134
    %136 = vmatmul.f32.gmra.mxu0 %v54
    %v137 = vpop.f32.mrf.mxu0
    %v138 = vadd.f32 %v97, %v137
    %139 = vmatmul.f32.gmra.mxu0 %v55
    %v140 = vpop.f32.mrf.mxu0
    %v141 = vadd.f32 %v97, %v140
    %142 = vmatmul.f32.gmra.mxu0 %v56
    %v143 = vpop.f32.mrf.mxu0
    %v144 = vadd.f32 %v97, %v143
    %145 = vmatmul.f32.gmra.mxu0 %v57
    %v146 = vpop.f32.mrf.mxu0
    %v147 = vadd.f32 %v97, %v146
    %148 = vmatmul.f32.gmra.mxu0 %v58
    %v149 = vpop.f32.mrf.mxu0
    %v150 = vadd.f32 %v97, %v149
    %151 = vmatmul.f32.gmra.mxu0 %v59
    %v152 = vpop.f32.mrf.mxu0
    %v153 = vadd.f32 %v97, %v152
    %154 = vmatmul.f32.gmra.mxu0 %v60
    %v155 = vpop.f32.mrf.mxu0
    %v156 = vadd.f32 %v97, %v155
    %157 = vmatmul.f32.gmra.mxu0 %v61
    %v158 = vpop.f32.mrf.mxu0
    %v159 = vadd.f32 %v97, %v158
    %160 = vmatmul.f32.gmra.mxu0 %v62
    %v161 = vpop.f32.mrf.mxu0
    %v162 = vadd.f32 %v97, %v161
    %163 = vmatmul.f32.gmra.mxu0 %v63
    %v164 = vpop.f32.mrf.mxu0
    %v165 = vadd.f32 %v97, %v164
    %166 = vmatmul.f32.gmra.mxu0 %v64
    %v167 = vpop.f32.mrf.mxu0
    %v168 = vadd.f32 %v97, %v167
    %169 = vmatmul.f32.gmra.mxu0 %v65
    %v170 = vpop.f32.mrf.mxu0
    %v171 = vadd.f32 %v97, %v170
    %172 = vmatmul.f32.gmra.mxu0 %v66
    %v173 = vpop.f32.mrf.mxu0
    %v174 = vadd.f32 %v97, %v173
    %175 = vmatmul.f32.gmra.mxu0 %v67
    %v176 = vpop.f32.mrf.mxu0
    %v177 = vadd.f32 %v97, %v176
    %178 = vmatmul.f32.gmra.mxu0 %v68
    %v179 = vpop.f32.mrf.mxu0
    %v180 = vadd.f32 %v97, %v179
    %181 = vmatmul.f32.gmra.mxu0 %v69
    %v182 = vpop.f32.mrf.mxu0
    %v183 = vadd.f32 %v97, %v182
    %184 = vmatmul.f32.gmra.mxu0 %v70
    %v185 = vpop.f32.mrf.mxu0
    %v186 = vadd.f32 %v97, %v185
    %187 = vmatmul.f32.gmra.mxu0 %v71
    %v188 = vpop.f32.mrf.mxu0
    %v189 = vadd.f32 %v97, %v188
    %190 = vmatmul.f32.gmra.mxu0 %v72
    %v191 = vpop.f32.mrf.mxu0
    %v192 = vadd.f32 %v97, %v191
    %193 = vmatmul.f32.gmra.mxu0 %v73
    %v194 = vpop.f32.mrf.mxu0
    %v195 = vadd.f32 %v97, %v194
    %196 = vmatmul.f32.gmra.mxu0 %v74
    %v197 = vpop.f32.mrf.mxu0
    %v198 = vadd.f32 %v97, %v197
    %199 = vmatmul.f32.gmra.mxu0 %v75
    %v200 = vpop.f32.mrf.mxu0
    %v201 = vadd.f32 %v97, %v200
    %202 = vmatmul.f32.gmra.mxu0 %v76
    %v203 = vpop.f32.mrf.mxu0
    %v204 = vadd.f32 %v97, %v203
    %205 = vmatmul.f32.gmra.mxu0 %v77
    %v206 = vpop.f32.mrf.mxu0
    %v207 = vadd.f32 %v97, %v206
    %208 = vmatmul.f32.gmra.mxu0 %v78
    %v209 = vpop.f32.mrf.mxu0
    %v210 = vadd.f32 %v97, %v209
    %211 = vdwg.mxu0
    %212 = vst [vmem:[#allocation7] sm:$0xff] %v117
    %213 = vst [vmem:[#allocation7 + $0x8] sm:$0xff] %v120
    %214 = vst [vmem:[#allocation7 + $0x10] sm:$0xff] %v123
    %215 = vst [vmem:[#allocation7 + $0x18] sm:$0xff] %v126
    %216 = vst [vmem:[#allocation7 + $0x20] sm:$0xff] %v129
    %217 = vst [vmem:[#allocation7 + $0x28] sm:$0xff] %v132
    %218 = vst [vmem:[#allocation7 + $0x30] sm:$0xff] %v135
    %219 = vst [vmem:[#allocation7 + $0x38] sm:$0xff] %v138
    %220 = vst [vmem:[#allocation7 + $0x40] sm:$0xff] %v141
    %221 = vst [vmem:[#allocation7 + $0x48] sm:$0xff] %v144
    %222 = vst [vmem:[#allocation7 + $0x50] sm:$0xff] %v147
    %223 = vst [vmem:[#allocation7 + $0x58] sm:$0xff] %v150
    %224 = vst [vmem:[#allocation7 + $0x60] sm:$0xff] %v153
    %225 = vst [vmem:[#allocation7 + $0x68] sm:$0xff] %v156
    %226 = vst [vmem:[#allocation7 + $0x70] sm:$0xff] %v159
    %227 = vst [vmem:[#allocation7 + $0x78] sm:$0xff] %v162
    %228 = vst [vmem:[#allocation7 + $0x80] sm:$0xff] %v165
    %229 = vst [vmem:[#allocation7 + $0x88] sm:$0xff] %v168
    %230 = vst [vmem:[#allocation7 + $0x90] sm:$0xff] %v171
    %231 = vst [vmem:[#allocation7 + $0x98] sm:$0xff] %v174
    %232 = vst [vmem:[#allocation7 + $0xa0] sm:$0xff] %v177
    %233 = vst [vmem:[#allocation7 + $0xa8] sm:$0xff] %v180
    %234 = vst [vmem:[#allocation7 + $0xb0] sm:$0xff] %v183
    %235 = vst [vmem:[#allocation7 + $0xb8] sm:$0xff] %v186
    %236 = vst [vmem:[#allocation7 + $0xc0] sm:$0xff] %v189
    %237 = vst [vmem:[#allocation7 + $0xc8] sm:$0xff] %v192
    %238 = vst [vmem:[#allocation7 + $0xd0] sm:$0xff] %v195
    %239 = vst [vmem:[#allocation7 + $0xd8] sm:$0xff] %v198
    %240 = vst [vmem:[#allocation7 + $0xe0] sm:$0xff] %v201
    %241 = vst [vmem:[#allocation7 + $0xe8] sm:$0xff] %v204
    %242 = vst [vmem:[#allocation7 + $0xf0] sm:$0xff] %v207
    %243 = vst [vmem:[#allocation7 + $0xf8] sm:$0xff] %v210
    // Predicated region
    $region22: #{tpu_custom_call.1} parent=1 // pred_check
      _
    $region23: #{tpu_custom_call.1} parent=1 // pred_check_branch
      %245 = sbr.rel (0) target = $region25
    $region24: #{tpu_custom_call.1} parent=1 // pred_region
      %247 = vsyncadd [#allocation4], 0
      %s248 = sshll.u32 [#allocation7], 4
      %s249 = int_to_ptr.vmem [resolvable:$true] %s248
      %s250 = sshll.u32 %s3, 4
      %s251 = int_to_ptr.hbm [resolvable:$true] %s250
      %256 = dma.vmem_to_hbm [thread:$0]  %s249, 4096, %s251, [#allocation4], 128, 128, 8
    $region25: #{tpu_custom_call.1} parent=1 // pred_fallthru
      _
    // Predicated region
    $region26: #{tpu_custom_call.1} parent=1 // pred_check
      _
    $region27: #{tpu_custom_call.1} parent=1 // pred_check_branch
      %258 = sbr.rel (0) target = $region29
    $region28: #{tpu_custom_call.1} parent=1 // pred_region
      %260 = dma.done [#allocation4], 4096
    $region29: #{tpu_custom_call.1} parent=1 // pred_fallthru
      _
    %261 = vsyncpa [#allocation3], 1
    %262 = vsyncpa [#allocation6], 1
    %263 = vsyncpa [#allocation4], 1

</llo_original>
